<compile_context>
chip_gen: v7x
topology: tpu7x:2x2x1
jax: 0.10.0
libtpu: 0.0.40
codegen_flags: <defaults>
</compile_context>

<pallas_src>
import jax
import jax.numpy as jnp
from jax import lax
from jax.experimental import pallas as pl
from jax.experimental.pallas import tpu as pltpu

# ---------------- module hyper-parameters (deterministic, in-script) ----------------
B, C_IN, H, W = 2, 4, 16, 16
NUM_HIDDEN = 32            # must divide LANES and be divisible by GROUPS
FILTER = 3
STRIDE = 1                 # stride=1 keeps H, W
GROUPS = 16
T_M = 1.0 / 2.0            # self.t_m = 1 / t_m with t_m = 2.0
V_THRESHOLD = 1.0
EPS = 1e-5                 # nn.GroupNorm default eps

LANES = 128                                # TPU lane width
PACK = LANES // NUM_HIDDEN                 # spatial positions packed per dense row (= 4)
CPG = NUM_HIDDEN // GROUPS                 # channels per group (= 2)


# ---------------------------------- Pallas kernel -----------------------------------
def lif_kernel(patches_ref, w_ref, gmask_ref, gamma_ref, beta_ref, h_ref,
               s_out_ref, h_out_ref):
    # One grid step == one batch sample.  All tensors are lane-dense [rows, 128]
    # with lane j -> channel j % NUM_HIDDEN, spatial offset j // NUM_HIDDEN.

    # Conv2d as im2col matmul with a block-diagonal weight -> lane-dense result.
    conv = jnp.dot(patches_ref[0], w_ref[...],
                   preferred_element_type=jnp.float32)           # [rows, 128] f32

    # GroupNorm statistics: per-lane column sums / sums-of-squares, pooled over
    # each group's lanes (both channels x 4 spatial offsets) with a precomputed
    # 0/1 membership matrix.  Everything stays in f32.
    col_sum = jnp.sum(conv, axis=0, keepdims=True)               # [1, 128]
    col_sq = jnp.sum(conv * conv, axis=0, keepdims=True)         # [1, 128]
    stats = jnp.concatenate([col_sum, col_sq], axis=0)           # [2, 128]
    pooled = jnp.dot(stats, gmask_ref[...],
                     preferred_element_type=jnp.float32)         # [2, 128]

    inv_n = GROUPS / float(conv.shape[0] * conv.shape[1])        # 1 / (HW * CPG)
    mean = pooled[0:1, :] * inv_n
    # NOTE: one-pass E[x^2] - mean^2 in f32; fine at these magnitudes — switch to
    # a two-pass form if activations ever grow large enough for cancellation.
    var = pooled[1:2, :] * inv_n - mean * mean
    inv_std = lax.rsqrt(var + EPS)

    # Fold the GroupNorm affine and the (1 - t_m) leak into one per-lane scale/bias:
    #   h_s = h * t_m + ((conv - mean) * inv_std * gamma + beta) * (1 - t_m)
    g = gamma_ref[...]
    scale = (1.0 - T_M) * inv_std * g                            # [1, 128]
    bias = (1.0 - T_M) * (beta_ref[...] - mean * inv_std * g)    # [1, 128]

    # LIF update (lane-dense, f32)
    h_s = h_ref[0] * T_M + conv * scale + bias                   # [rows, 128]
    s_t = (h_s >= V_THRESHOLD).astype(jnp.float32)               # heaviside
    s_out_ref[0] = s_t
    h_out_ref[0] = h_s - s_t


# ------------------------------------ glue (JAX) -------------------------------------
def _im2col_nhwc(x_nhwc, k, pad):
    b, h, w, cin = x_nhwc.shape
    xp = jnp.pad(x_nhwc, ((0, 0), (pad, pad), (pad, pad), (0, 0)))
    cols = []
    for kh in range(k):
        for kw in range(k):
            cols.append(xp[:, kh:kh + h, kw:kw + w, :])
    patches = jnp.stack(cols, axis=3)                  # [B, H, W, K*K, Cin]
    return patches.reshape(b, h * w, k * k * cin)      # patch order (kh, kw, cin)


def prepare_params(conv_w, gamma, beta):
    """Timestep-invariant parameters in kernel layout (hoist out of a rollout loop)."""
    cout, cin, k, _ = conv_w.shape
    kkc = k * k * cin
    pack = LANES // cout
    cpg = cout // GROUPS
    # (kh, kw, cin) -> cout, matching the im2col patch order.
    w2 = jnp.transpose(conv_w, (2, 3, 1, 0)).reshape(kkc, cout).astype(jnp.float32)
    # Block-diagonal weight so the matmul directly emits the lane-dense layout.
    w_big = jnp.kron(jnp.eye(pack, dtype=jnp.float32), w2).astype(jnp.bfloat16)
    # Group-membership pooling matrix over the 128 lanes (lane -> channel = lane % cout).
    grp = (jnp.arange(LANES) % cout) // cpg
    gmask = (grp[:, None] == grp[None, :]).astype(jnp.float32)   # [128, 128]
    gamma_l = jnp.tile(gamma.reshape(1, cout).astype(jnp.float32), (1, pack))  # [1, 128]
    beta_l = jnp.tile(beta.reshape(1, cout).astype(jnp.float32), (1, pack))    # [1, 128]
    return w_big, gmask, gamma_l, beta_l


def lif_cell_apply(patches_d, h_d, w_big, gmask, gamma_l, beta_l):
    """All operands already in kernel layout:
       patches_d [B, rows, PACK*K*K*Cin] bf16, h_d [B, rows, 128] f32."""
    b, rows, kkc_p = patches_d.shape
    lanes = h_d.shape[-1]
    s_d, h_new_d = pl.pallas_call(
        lif_kernel,
        out_shape=(
            jax.ShapeDtypeStruct((b, rows, lanes), jnp.float32),
            jax.ShapeDtypeStruct((b, rows, lanes), jnp.float32),
        ),
        grid_spec=pltpu.PrefetchScalarGridSpec(
            num_scalar_prefetch=0,
            grid=(b,),
            in_specs=[
                pl.BlockSpec((1, rows, kkc_p), lambda i: (i, 0, 0)),   # patches
                pl.BlockSpec((kkc_p, lanes), lambda i: (0, 0)),        # block-diag weight
                pl.BlockSpec((lanes, lanes), lambda i: (0, 0)),        # group mask
                pl.BlockSpec((1, lanes), lambda i: (0, 0)),            # gamma
                pl.BlockSpec((1, lanes), lambda i: (0, 0)),            # beta
                pl.BlockSpec((1, rows, lanes), lambda i: (i, 0, 0)),   # h_t
            ],
            out_specs=(
                pl.BlockSpec((1, rows, lanes), lambda i: (i, 0, 0)),   # s_t
                pl.BlockSpec((1, rows, lanes), lambda i: (i, 0, 0)),   # h_t'
            ),
        ),
        input_output_aliases={5: 1},   # reuse the h_t buffer for h_t'
        compiler_params=pltpu.CompilerParams(
            dimension_semantics=("parallel",)),   # 2-wide grid -> both v7x TCs
    )(patches_d, w_big, gmask, gamma_l, beta_l, h_d)
    return s_d, h_new_d


def lif_cell_forward(x_nchw, h_nchw, g_nchw, conv_w, gamma, beta):
    """NCHW adapter matching the PyTorch signature.  For a multi-timestep rollout,
    keep h in kernel layout and call lif_cell_apply directly so the transposes /
    reshapes below are hoisted off the per-step path."""
    del g_nchw                                      # unused by the reference forward
    b, cin, h, w = x_nchw.shape
    cout, _, k, _ = conv_w.shape
    hw = h * w
    rows = hw * cout // LANES

    w_big, gmask, gamma_l, beta_l = prepare_params(conv_w, gamma, beta)

    # conv operands in bf16 (MXU-native, half DMA); state stays f32.
    x_nhwc = jnp.transpose(x_nchw, (0, 2, 3, 1)).astype(jnp.bfloat16)
    patches = _im2col_nhwc(x_nhwc, k, k // 2)                    # [B, HW, K*K*Cin]
    patches_d = patches.reshape(b, rows, PACK * k * k * cin)     # 4 positions per row

    h_d = (jnp.transpose(h_nchw, (0, 2, 3, 1))
           .astype(jnp.float32).reshape(b, rows, LANES))         # lane-dense state

    s_d, h_new_d = lif_cell_apply(patches_d, h_d, w_big, gmask, gamma_l, beta_l)

    s_t = jnp.transpose(s_d.reshape(b, h, w, cout), (0, 3, 1, 2))
    h_t = jnp.transpose(h_new_d.reshape(b, h, w, cout), (0, 3, 1, 2))
    return s_t, h_t


# ------------------------------- pure-JAX reference ----------------------------------
def reference_forward(x, h, conv_w, gamma, beta):
    # Same operand precision as the kernel: bf16 conv operands, f32 accumulation.
    conv = lax.conv_general_dilated(
        x.astype(jnp.bfloat16), conv_w.astype(jnp.bfloat16),
        window_strides=(STRIDE, STRIDE),
        padding=[(FILTER // 2, FILTER // 2)] * 2,
        dimension_numbers=("NCHW", "OIHW", "NCHW"),
        preferred_element_type=jnp.float32)
    b, c, hh, ww = conv.shape
    g = conv.reshape(b, GROUPS, c // GROUPS, hh, ww)
    mean = g.mean(axis=(2, 3, 4), keepdims=True)
    var = ((g - mean) ** 2).mean(axis=(2, 3, 4), keepdims=True)
    gn = ((g - mean) / jnp.sqrt(var + EPS)).reshape(b, c, hh, ww)
    gn = gn * gamma.reshape(1, c, 1, 1) + beta.reshape(1, c, 1, 1)
    h_s = h * T_M + gn * (1.0 - T_M)
    s = (h_s - V_THRESHOLD >= 0.0).astype(jnp.float32)
    return s, h_s - s


# -------------------------------------- main ------------------------------------------
if __name__ == "__main__":
    key = jax.random.PRNGKey(0)
    k_x, k_h, k_g, k_w, k_ga, k_be = jax.random.split(key, 6)

    x_t = jax.random.normal(k_x, (B, C_IN, H, W), jnp.float32)
    h_t = jax.random.normal(k_h, (B, NUM_HIDDEN, H, W), jnp.float32)
    g_t = jax.random.normal(k_g, (B, NUM_HIDDEN, H, W), jnp.float32)  # unused (parity)

    conv_w = 0.1 * jax.random.normal(k_w, (NUM_HIDDEN, C_IN, FILTER, FILTER), jnp.float32)
    gamma = 1.0 + 0.1 * jax.random.normal(k_ga, (NUM_HIDDEN,), jnp.float32)
    beta = 0.1 * jax.random.normal(k_be, (NUM_HIDDEN,), jnp.float32)

    s_out, h_out = jax.jit(lif_cell_forward)(x_t, h_t, g_t, conv_w, gamma, beta)
    jax.block_until_ready((s_out, h_out))

    s_ref, h_ref_out = reference_forward(x_t, h_t, conv_w, gamma, beta)

    assert s_out.shape == (B, NUM_HIDDEN, H, W) and h_out.shape == (B, NUM_HIDDEN, H, W)
    # Compare membrane potentials h_s = h' + s (insensitive to spike flips caused
    # by bf16 / summation-order noise exactly at the threshold).
    hs_k = h_out + s_out
    hs_r = h_ref_out + s_ref
    assert jnp.allclose(hs_k, hs_r, atol=5e-3, rtol=1e-3), \
        float(jnp.max(jnp.abs(hs_k - hs_r)))
    # Spikes must agree except (at most) where h_s sits right at the threshold.
    mism = s_out != s_ref
    near = jnp.abs(hs_r - V_THRESHOLD) < 1e-2
    assert bool(jnp.all(jnp.logical_or(~mism, near)))

    print("KERNEL_OK")
</pallas_src>

<mosaic_0001>
module attributes {stable_mosaic.version = 11 : i64} {
  func.func @lif_kernel(%arg0: i32, %arg1: memref<1x64x144xbf16, #tpu.memory_space<vmem>>, %arg2: memref<144x128xbf16, #tpu.memory_space<vmem>>, %arg3: memref<128x128xf32, #tpu.memory_space<vmem>>, %arg4: memref<1x128xf32, #tpu.memory_space<vmem>>, %arg5: memref<1x128xf32, #tpu.memory_space<vmem>>, %arg6: memref<1x64x128xf32, #tpu.memory_space<vmem>>, %arg7: memref<1x64x128xf32, #tpu.memory_space<vmem>>, %arg8: memref<1x64x128xf32, #tpu.memory_space<vmem>>) attributes {dimension_semantics = [#tpu.dimension_semantics<parallel>], iteration_bounds = array<i64: 2>, scalar_prefetch = 0 : i64, scratch_operands = 0 : i64, tpu.core_type = #tpu.core_type<tc>, window_params = [{transform_indices = @transform_0, window_bounds = array<i64: 1, 64, 144>}, {pipeline_mode = #tpu.pipeline_mode<synchronous>, transform_indices = @transform_1, window_bounds = array<i64: 144, 128>}, {pipeline_mode = #tpu.pipeline_mode<synchronous>, transform_indices = @transform_2, window_bounds = array<i64: 128, 128>}, {pipeline_mode = #tpu.pipeline_mode<synchronous>, transform_indices = @transform_3, window_bounds = array<i64: 1, 128>}, {pipeline_mode = #tpu.pipeline_mode<synchronous>, transform_indices = @transform_4, window_bounds = array<i64: 1, 128>}, {transform_indices = @transform_5, window_bounds = array<i64: 1, 64, 128>}, {transform_indices = @transform_6, window_bounds = array<i64: 1, 64, 128>}, {transform_indices = @transform_7, window_bounds = array<i64: 1, 64, 128>}]} {
    %c0 = arith.constant 0 : index
    %c0_0 = arith.constant 0 : index
    %c0_1 = arith.constant 0 : index
    %0 = vector.load %arg1[%c0, %c0_0, %c0_1] : memref<1x64x144xbf16, #tpu.memory_space<vmem>>, vector<1x64x144xbf16>
    %1 = vector.shape_cast %0 : vector<1x64x144xbf16> to vector<64x144xbf16>
    %c0_2 = arith.constant 0 : index
    %c0_3 = arith.constant 0 : index
    %2 = vector.load %arg2[%c0_2, %c0_3] : memref<144x128xbf16, #tpu.memory_space<vmem>>, vector<144x128xbf16>
    %cst = arith.constant dense<0.000000e+00> : vector<64x128xf32>
    %3 = tpu.matmul %1, %2, %cst {dimension_numbers = #tpu.dot_dimension_numbers<[1], [0], [0], [1], [0, 0, 1, 1], [], []>} : vector<64x144xbf16>, vector<144x128xbf16>, vector<64x128xf32> -> vector<64x128xf32>
    %cst_4 = arith.constant dense<0.000000e+00> : vector<128xf32>
    %4 = vector.multi_reduction <add>, %3, %cst_4 [0] : vector<64x128xf32> to vector<128xf32>
    %5 = vector.shape_cast %4 : vector<128xf32> to vector<1x128xf32>
    %6 = arith.mulf %3, %3 : vector<64x128xf32>
    %cst_5 = arith.constant dense<0.000000e+00> : vector<128xf32>
    %7 = vector.multi_reduction <add>, %6, %cst_5 [0] : vector<64x128xf32> to vector<128xf32>
    %8 = vector.shape_cast %7 : vector<128xf32> to vector<1x128xf32>
    %9 = tpu.concatenate %5, %8 in 0 : vector<1x128xf32>, vector<1x128xf32> -> vector<2x128xf32>
    %c0_6 = arith.constant 0 : index
    %c0_7 = arith.constant 0 : index
    %10 = vector.load %arg3[%c0_6, %c0_7] : memref<128x128xf32, #tpu.memory_space<vmem>>, vector<128x128xf32>
    %cst_8 = arith.constant dense<0.000000e+00> : vector<2x128xf32>
    %11 = tpu.matmul %9, %10, %cst_8 {dimension_numbers = #tpu.dot_dimension_numbers<[1], [0], [0], [1], [0, 0, 1, 1], [], []>} : vector<2x128xf32>, vector<128x128xf32>, vector<2x128xf32> -> vector<2x128xf32>
    %12 = vector.extract_strided_slice %11 {offsets = [0, 0], sizes = [1, 128], strides = [1, 1]} : vector<2x128xf32> to vector<1x128xf32>
    %cst_9 = arith.constant 0.001953125 : f32
    %13 = vector.broadcast %cst_9 : f32 to vector<1x128xf32>
    %14 = arith.mulf %12, %13 : vector<1x128xf32>
    %15 = vector.extract_strided_slice %11 {offsets = [1, 0], sizes = [1, 128], strides = [1, 1]} : vector<2x128xf32> to vector<1x128xf32>
    %cst_10 = arith.constant 0.001953125 : f32
    %16 = vector.broadcast %cst_10 : f32 to vector<1x128xf32>
    %17 = arith.mulf %15, %16 : vector<1x128xf32>
    %18 = arith.mulf %14, %14 : vector<1x128xf32>
    %19 = arith.subf %17, %18 : vector<1x128xf32>
    %cst_11 = arith.constant 9.99999974E-6 : f32
    %20 = vector.broadcast %cst_11 : f32 to vector<1x128xf32>
    %21 = arith.addf %19, %20 : vector<1x128xf32>
    %22 = math.rsqrt %21 : vector<1x128xf32>
    %c0_12 = arith.constant 0 : index
    %c0_13 = arith.constant 0 : index
    %23 = vector.load %arg4[%c0_12, %c0_13] : memref<1x128xf32, #tpu.memory_space<vmem>>, vector<1x128xf32>
    %cst_14 = arith.constant 5.000000e-01 : f32
    %24 = vector.broadcast %cst_14 : f32 to vector<1x128xf32>
    %25 = arith.mulf %24, %22 : vector<1x128xf32>
    %26 = arith.mulf %25, %23 : vector<1x128xf32>
    %c0_15 = arith.constant 0 : index
    %c0_16 = arith.constant 0 : index
    %27 = vector.load %arg5[%c0_15, %c0_16] : memref<1x128xf32, #tpu.memory_space<vmem>>, vector<1x128xf32>
    %28 = arith.mulf %14, %22 : vector<1x128xf32>
    %29 = arith.mulf %28, %23 : vector<1x128xf32>
    %30 = arith.subf %27, %29 : vector<1x128xf32>
    %cst_17 = arith.constant 5.000000e-01 : f32
    %31 = vector.broadcast %cst_17 : f32 to vector<1x128xf32>
    %32 = arith.mulf %31, %30 : vector<1x128xf32>
    %c0_18 = arith.constant 0 : index
    %c0_19 = arith.constant 0 : index
    %c0_20 = arith.constant 0 : index
    %33 = vector.load %arg6[%c0_18, %c0_19, %c0_20] : memref<1x64x128xf32, #tpu.memory_space<vmem>>, vector<1x64x128xf32>
    %34 = vector.shape_cast %33 : vector<1x64x128xf32> to vector<64x128xf32>
    %cst_21 = arith.constant 5.000000e-01 : f32
    %35 = vector.broadcast %cst_21 : f32 to vector<64x128xf32>
    %36 = arith.mulf %34, %35 : vector<64x128xf32>
    %37 = vector.broadcast %26 : vector<1x128xf32> to vector<64x128xf32>
    %38 = arith.mulf %3, %37 : vector<64x128xf32>
    %39 = arith.addf %36, %38 : vector<64x128xf32>
    %40 = vector.broadcast %32 : vector<1x128xf32> to vector<64x128xf32>
    %41 = arith.addf %39, %40 : vector<64x128xf32>
    %cst_22 = arith.constant 1.000000e+00 : f32
    %42 = vector.broadcast %cst_22 : f32 to vector<64x128xf32>
    %43 = arith.cmpf oge, %41, %42 : vector<64x128xf32>
    %44 = arith.extui %43 : vector<64x128xi1> to vector<64x128xi32>
    %45 = arith.sitofp %44 : vector<64x128xi32> to vector<64x128xf32>
    %c0_23 = arith.constant 0 : index
    %c0_24 = arith.constant 0 : index
    %c0_25 = arith.constant 0 : index
    %46 = vector.load %arg7[%c0_23, %c0_24, %c0_25] : memref<1x64x128xf32, #tpu.memory_space<vmem>>, vector<1x64x128xf32>
    %47 = vector.shape_cast %46 : vector<1x64x128xf32> to vector<64x128xf32>
    %48 = vector.shape_cast %45 : vector<64x128xf32> to vector<1x64x128xf32>
    tpu.vector_store %arg7[%c0_23, %c0_24, %c0_25], %48 {strides = array<i32>} : memref<1x64x128xf32, #tpu.memory_space<vmem>>, vector<1x64x128xf32>,
    %49 = arith.subf %41, %45 : vector<64x128xf32>
    %c0_26 = arith.constant 0 : index
    %c0_27 = arith.constant 0 : index
    %c0_28 = arith.constant 0 : index
    %50 = vector.load %arg8[%c0_26, %c0_27, %c0_28] : memref<1x64x128xf32, #tpu.memory_space<vmem>>, vector<1x64x128xf32>
    %51 = vector.shape_cast %50 : vector<1x64x128xf32> to vector<64x128xf32>
    %52 = vector.shape_cast %49 : vector<64x128xf32> to vector<1x64x128xf32>
    tpu.vector_store %arg8[%c0_26, %c0_27, %c0_28], %52 {strides = array<i32>} : memref<1x64x128xf32, #tpu.memory_space<vmem>>, vector<1x64x128xf32>,
    return
  }
  func.func @transform_0(%arg0: i32) -> (i32, i32, i32) {
    %c0_i32 = arith.constant 0 : i32
    %c0_i32_0 = arith.constant 0 : i32
    %c0_i32_1 = arith.constant 0 : i32
    return %arg0, %c0_i32, %c0_i32_0 : i32, i32, i32
  }
  func.func @transform_1(%arg0: i32) -> (i32, i32) {
    %c0_i32 = arith.constant 0 : i32
    %c0_i32_0 = arith.constant 0 : i32
    %c0_i32_1 = arith.constant 0 : i32
    return %c0_i32, %c0_i32_0 : i32, i32
  }
  func.func @transform_2(%arg0: i32) -> (i32, i32) {
    %c0_i32 = arith.constant 0 : i32
    %c0_i32_0 = arith.constant 0 : i32
    %c0_i32_1 = arith.constant 0 : i32
    return %c0_i32, %c0_i32_0 : i32, i32
  }
  func.func @transform_3(%arg0: i32) -> (i32, i32) {
    %c0_i32 = arith.constant 0 : i32
    %c0_i32_0 = arith.constant 0 : i32
    %c0_i32_1 = arith.constant 0 : i32
    return %c0_i32, %c0_i32_0 : i32, i32
  }
  func.func @transform_4(%arg0: i32) -> (i32, i32) {
    %c0_i32 = arith.constant 0 : i32
    %c0_i32_0 = arith.constant 0 : i32
    %c0_i32_1 = arith.constant 0 : i32
    return %c0_i32, %c0_i32_0 : i32, i32
  }
  func.func @transform_5(%arg0: i32) -> (i32, i32, i32) {
    %c0_i32 = arith.constant 0 : i32
    %c0_i32_0 = arith.constant 0 : i32
    %c0_i32_1 = arith.constant 0 : i32
    return %arg0, %c0_i32, %c0_i32_0 : i32, i32, i32
  }
  func.func @transform_6(%arg0: i32) -> (i32, i32, i32) {
    %c0_i32 = arith.constant 0 : i32
    %c0_i32_0 = arith.constant 0 : i32
    %c0_i32_1 = arith.constant 0 : i32
    return %arg0, %c0_i32, %c0_i32_0 : i32, i32, i32
  }
  func.func @transform_7(%arg0: i32) -> (i32, i32, i32) {
    %c0_i32 = arith.constant 0 : i32
    %c0_i32_0 = arith.constant 0 : i32
    %c0_i32_1 = arith.constant 0 : i32
    return %arg0, %c0_i32, %c0_i32_0 : i32, i32, i32
  }
}

</mosaic_0001>

<llo_original>
// kernel: mul.4
$region0: #{mul.4}
  %s0 = inlined_call_operand.vmem [shape: f32[3,3,4,32], index: 0, kind: input, shape index: {}]
  %s1 = inlined_call_operand.vmem [shape: f32[36,32], index: 1, kind: output, shape index: {}]
  $region1: #{mul.4} parent=0
    #allocation0 [shape = 'u8[36864]{0}', space=vmem, size = 0x9000, scoped, tag = 'scoped mem for input reshape']
    %s3 = sshllo.u32 0, 4
    %s4 = smul.addr 4, 8
    %s5 = scalar_lea.vmem %s0, %s4
    %v6 = vld [vmem:[%s5] sm:%s3]
    %s7 = scalar_lea.vmem [#allocation0], 64
    %8 = vst [vmem:[%s7] sm:%s3] %v6
    %s9 = smul.addr 4, 7
    %s10 = scalar_lea.vmem %s0, %s9
    %v11 = vld [vmem:[%s10] sm:%s3]
    %s12 = scalar_lea.vmem [#allocation0], 56
    %13 = vst [vmem:[%s12] sm:%s3] %v11
    %s14 = smul.addr 4, 6
    %s15 = scalar_lea.vmem %s0, %s14
    %v16 = vld [vmem:[%s15] sm:%s3]
    %s17 = scalar_lea.vmem [#allocation0], 48
    %18 = vst [vmem:[%s17] sm:%s3] %v16
    %s19 = smul.addr 4, 5
    %s20 = scalar_lea.vmem %s0, %s19
    %v21 = vld [vmem:[%s20] sm:%s3]
    %s22 = scalar_lea.vmem [#allocation0], 40
    %23 = vst [vmem:[%s22] sm:%s3] %v21
    %s24 = smul.addr 4, 4
    %s25 = scalar_lea.vmem %s0, %s24
    %v26 = vld [vmem:[%s25] sm:%s3]
    %s27 = scalar_lea.vmem [#allocation0], 32
    %28 = vst [vmem:[%s27] sm:%s3] %v26
    %s29 = smul.addr 4, 3
    %s30 = scalar_lea.vmem %s0, %s29
    %v31 = vld [vmem:[%s30] sm:%s3]
    %s32 = scalar_lea.vmem [#allocation0], 24
    %33 = vst [vmem:[%s32] sm:%s3] %v31
    %s34 = smul.addr 4, 2
    %s35 = scalar_lea.vmem %s0, %s34
    %v36 = vld [vmem:[%s35] sm:%s3]
    %s37 = scalar_lea.vmem [#allocation0], 16
    %38 = vst [vmem:[%s37] sm:%s3] %v36
    %s39 = scalar_lea.vmem %s0, 4
    %v40 = vld [vmem:[%s39] sm:%s3]
    %s41 = scalar_lea.vmem [#allocation0], 8
    %42 = vst [vmem:[%s41] sm:%s3] %v40
    %v43 = vld [vmem:[%s0] sm:%s3]
    %44 = vst [vmem:[#allocation0] sm:%s3] %v43
    %v45 = vld [vmem:[#allocation0] sm:$0xf]
    %vm46 = vcmask 261120
    %47 = vst.msk [vmem:[%s1] sm:$0xf] %vm46, %v45
    %s48 = scalar_lea.vmem [#allocation0], 8
    %v49 = vld [vmem:[%s48] sm:$0xf]
    %vm50 = vcmask 261120
    %s51 = scalar_lea.vmem %s1, 4
    %52 = vst.msk [vmem:[%s51] sm:$0xf] %vm50, %v49
    %s53 = scalar_lea.vmem [#allocation0], 16
    %v54 = vld [vmem:[%s53] sm:$0xf]
    %vm55 = vcmask 261120
    %s56 = scalar_lea.vmem %s1, 8
    %57 = vst.msk [vmem:[%s56] sm:$0xf] %vm55, %v54
    %s58 = scalar_lea.vmem [#allocation0], 24
    %v59 = vld [vmem:[%s58] sm:$0xf]
    %vm60 = vcmask 261120
    %s61 = scalar_lea.vmem %s1, 12
    %62 = vst.msk [vmem:[%s61] sm:$0xf] %vm60, %v59
    %s63 = scalar_lea.vmem [#allocation0], 32
    %v64 = vld [vmem:[%s63] sm:$0xf]
    %vm65 = vcmask 261120
    %s66 = scalar_lea.vmem %s1, 16
    %67 = vst.msk [vmem:[%s66] sm:$0xf] %vm65, %v64
    %s68 = scalar_lea.vmem [#allocation0], 40
    %v69 = vld [vmem:[%s68] sm:$0xf]
    %vm70 = vcmask 261120
    %s71 = scalar_lea.vmem %s1, 20
    %72 = vst.msk [vmem:[%s71] sm:$0xf] %vm70, %v69
    %s73 = scalar_lea.vmem [#allocation0], 48
    %v74 = vld [vmem:[%s73] sm:$0xf]
    %vm75 = vcmask 261120
    %s76 = scalar_lea.vmem %s1, 24
    %77 = vst.msk [vmem:[%s76] sm:$0xf] %vm75, %v74
    %s78 = scalar_lea.vmem [#allocation0], 56
    %v79 = vld [vmem:[%s78] sm:$0xf]
    %vm80 = vcmask 261120
    %s81 = scalar_lea.vmem %s1, 28
    %82 = vst.msk [vmem:[%s81] sm:$0xf] %vm80, %v79
    %s83 = scalar_lea.vmem [#allocation0], 64
    %v84 = vld [vmem:[%s83] sm:$0xf]
    %vm85 = vcmask 261120
    %s86 = scalar_lea.vmem %s1, 32
    %87 = vst.msk [vmem:[%s86] sm:$0xf] %vm85, %v84

// kernel: lif_cell_forward.1
$region0: #{lif_cell_forward.1}
  #allocation0 [shape = 'u32[]', space=smem, size = 0x4, offset = 0x4, fixed_abs, tag = 'smem constant byte address 0x4 - core index']
  #allocation1 [shape = 'u32[144,128]{1,0:T(1,128)}', space=vmem, size = 0x12000, scoped, tag = 'internal scratch']
  %s0 = inlined_call_operand.vmem [shape: bf16[2,64,144], index: 0, kind: input, shape index: {}]
  %s1 = inlined_call_operand.vmem [shape: bf16[144,128], index: 1, kind: input, shape index: {}]
  %s2 = inlined_call_operand.vmem [shape: f32[128,128], index: 2, kind: input, shape index: {}]
  %s3 = inlined_call_operand.vmem [shape: f32[1,128], index: 3, kind: input, shape index: {}]
  %s4 = inlined_call_operand.vmem [shape: f32[1,128], index: 4, kind: input, shape index: {}]
  %s5 = inlined_call_operand.vmem [shape: f32[2,64,128], index: 5, kind: input, shape index: {}, may-alias: {5,7}]
  %s6 = inlined_call_operand.vmem [shape: f32[2,64,128], index: 6, kind: output, shape index: {0}]
  %s7 = inlined_call_operand.vmem [shape: f32[2,64,128], index: 7, kind: output, shape index: {1}, may-alias: {5,7}]
  %8 = xla_tuple %s6, %s7
  %s9 = sld [smem:[#allocation0]]
  $region65: #{lif_cell_forward.1} parent=0
    _
  %s11 = ssub.s32 1, %s9
  %s12 = scalar_select 0, %s11, %s9
  loop: start=0, step=1, limit=4
  $region2: #{lif_cell_forward.1} parent=0 // loop_pre_header
    _
  $region3: #{lif_cell_forward.1} parent=0 // loop_header
    %s14 = sphi 0, %s18
    %p15 = scmp.ge.s32.totalorder %s14, 4
    %s24 = sphi 0, %s26
    %s27 = sphi 0, %s24
    %s28 = sphi 0, %s27
    %s44 = sphi 0, %s28
    %s48 = sphi 0, %s48
    %s50 = sphi 0, %s48
    %s51 = sphi 0, %s50
    %s65 = sphi 0, %s51
    %s69 = sphi 0, %s69
    %s71 = sphi 0, %s69
    %s72 = sphi 0, %s71
    %s86 = sphi 0, %s72
    %s90 = sphi 0, %s90
    %s92 = sphi 0, %s90
    %s93 = sphi 0, %s92
    %s107 = sphi 0, %s93
    %s111 = sphi 0, %s111
    %s113 = sphi 0, %s111
    %s114 = sphi 0, %s113
    %s128 = sphi 0, %s114
    %s134 = sphi 0, %s136
    %s137 = sphi 0, %s134
    %s138 = sphi 0, %s137
    %s154 = sphi 0, %s138
    %s160 = sphi 0, %s162
    %s163 = sphi 0, %s160
    %s164 = sphi 0, %s163
    %s180 = sphi 0, %s164
    %s186 = sphi 0, %s188
    %s189 = sphi 0, %s186
    %s190 = sphi 0, %s189
    %s206 = sphi 0, %s190
  $region4: #{lif_cell_forward.1} parent=0 // loop_header_branch
    %17 = sbr.rel (%p15) target = $region8
  $region5: #{lif_cell_forward.1} parent=0 // loop_body
    %s19 = ssub.s32 %s14, 1
    %s20 = ssub.s32 %s14, 2
    %s21 = sadd.s32 %s14, 1
    %s22 = ssub.s32 %s14, %s21
    %p23 = scmp.eq.s32.totalorder %s22, 0
    %s25 = sadd.s32 %s24, 1
    %s26 = scalar_select %p23, %s24, %s25
    %p29 = pneg %p23
    %p30 = scmp.eq.s32.totalorder %s14, 1
    %p31 = por %p29, %p30
    %p32 = scmp.ne.s32.totalorder %s24, %s27
    %p33 = scmp.eq.s32.totalorder %s14, 0
    %p34 = por %p32, %p33
    %p35 = scmp.ne.s32.totalorder %s24, %s27
    %p36 = scmp.eq.s32.totalorder %s19, 1
    %p37 = por %p35, %p36
    %p38 = scmp.ne.s32.totalorder %s27, %s28
    %p39 = scmp.eq.s32.totalorder %s19, 0
    %p40 = por %p38, %p39
    %p41 = scmp.ne.s32.totalorder %s27, %s28
    %p42 = scmp.eq.s32.totalorder %s20, 1
    %p43 = por %p41, %p42
    %p45 = scmp.ne.s32.totalorder %s28, %s44
    %p46 = scmp.eq.s32.totalorder %s20, 0
    %p47 = por %p45, %p46
    %s49 = sadd.s32 %s48, 1
    %p52 = scmp.eq.s32.totalorder %s14, 1
    %p53 = scmp.ne.s32.totalorder %s48, %s50
    %p54 = scmp.eq.s32.totalorder %s14, 0
    %p55 = por %p53, %p54
    %p56 = scmp.ne.s32.totalorder %s48, %s50
    %p57 = scmp.eq.s32.totalorder %s19, 1
    %p58 = por %p56, %p57
    %p59 = scmp.ne.s32.totalorder %s50, %s51
    %p60 = scmp.eq.s32.totalorder %s19, 0
    %p61 = por %p59, %p60
    %p62 = scmp.ne.s32.totalorder %s50, %s51
    %p63 = scmp.eq.s32.totalorder %s20, 1
    %p64 = por %p62, %p63
    %p66 = scmp.ne.s32.totalorder %s51, %s65
    %p67 = scmp.eq.s32.totalorder %s20, 0
    %p68 = por %p66, %p67
    %s70 = sadd.s32 %s69, 1
    %p73 = scmp.eq.s32.totalorder %s14, 1
    %p74 = scmp.ne.s32.totalorder %s69, %s71
    %p75 = scmp.eq.s32.totalorder %s14, 0
    %p76 = por %p74, %p75
    %p77 = scmp.ne.s32.totalorder %s69, %s71
    %p78 = scmp.eq.s32.totalorder %s19, 1
    %p79 = por %p77, %p78
    %p80 = scmp.ne.s32.totalorder %s71, %s72
    %p81 = scmp.eq.s32.totalorder %s19, 0
    %p82 = por %p80, %p81
    %p83 = scmp.ne.s32.totalorder %s71, %s72
    %p84 = scmp.eq.s32.totalorder %s20, 1
    %p85 = por %p83, %p84
    %p87 = scmp.ne.s32.totalorder %s72, %s86
    %p88 = scmp.eq.s32.totalorder %s20, 0
    %p89 = por %p87, %p88
    %s91 = sadd.s32 %s90, 1
    %p94 = scmp.eq.s32.totalorder %s14, 1
    %p95 = scmp.ne.s32.totalorder %s90, %s92
    %p96 = scmp.eq.s32.totalorder %s14, 0
    %p97 = por %p95, %p96
    %p98 = scmp.ne.s32.totalorder %s90, %s92
    %p99 = scmp.eq.s32.totalorder %s19, 1
    %p100 = por %p98, %p99
    %p101 = scmp.ne.s32.totalorder %s92, %s93
    %p102 = scmp.eq.s32.totalorder %s19, 0
    %p103 = por %p101, %p102
    %p104 = scmp.ne.s32.totalorder %s92, %s93
    %p105 = scmp.eq.s32.totalorder %s20, 1
    %p106 = por %p104, %p105
    %p108 = scmp.ne.s32.totalorder %s93, %s107
    %p109 = scmp.eq.s32.totalorder %s20, 0
    %p110 = por %p108, %p109
    %s112 = sadd.s32 %s111, 1
    %p115 = scmp.eq.s32.totalorder %s14, 1
    %p116 = scmp.ne.s32.totalorder %s111, %s113
    %p117 = scmp.eq.s32.totalorder %s14, 0
    %p118 = por %p116, %p117
    %p119 = scmp.ne.s32.totalorder %s111, %s113
    %p120 = scmp.eq.s32.totalorder %s19, 1
    %p121 = por %p119, %p120
    %p122 = scmp.ne.s32.totalorder %s113, %s114
    %p123 = scmp.eq.s32.totalorder %s19, 0
    %p124 = por %p122, %p123
    %p125 = scmp.ne.s32.totalorder %s113, %s114
    %p126 = scmp.eq.s32.totalorder %s20, 1
    %p127 = por %p125, %p126
    %p129 = scmp.ne.s32.totalorder %s114, %s128
    %p130 = scmp.eq.s32.totalorder %s20, 0
    %p131 = por %p129, %p130
    %s132 = ssub.s32 %s14, %s21
    %p133 = scmp.eq.s32.totalorder %s132, 0
    %s135 = sadd.s32 %s134, 1
    %s136 = scalar_select %p133, %s134, %s135
    %p139 = pneg %p133
    %p140 = scmp.eq.s32.totalorder %s14, 1
    %p141 = por %p139, %p140
    %p142 = scmp.ne.s32.totalorder %s134, %s137
    %p143 = scmp.eq.s32.totalorder %s14, 0
    %p144 = por %p142, %p143
    %p145 = scmp.ne.s32.totalorder %s134, %s137
    %p146 = scmp.eq.s32.totalorder %s19, 1
    %p147 = por %p145, %p146
    %p148 = scmp.ne.s32.totalorder %s137, %s138
    %p149 = scmp.eq.s32.totalorder %s19, 0
    %p150 = por %p148, %p149
    %p151 = scmp.ne.s32.totalorder %s137, %s138
    %p152 = scmp.eq.s32.totalorder %s20, 1
    %p153 = por %p151, %p152
    %p155 = scmp.ne.s32.totalorder %s138, %s154
    %p156 = scmp.eq.s32.totalorder %s20, 0
    %p157 = por %p155, %p156
    %s158 = ssub.s32 %s14, %s21
    %p159 = scmp.eq.s32.totalorder %s158, 0
    %s161 = sadd.s32 %s160, 1
    %s162 = scalar_select %p159, %s160, %s161
    %p165 = pneg %p159
    %p166 = scmp.eq.s32.totalorder %s14, 1
    %p167 = por %p165, %p166
    %p168 = scmp.ne.s32.totalorder %s160, %s163
    %p169 = scmp.eq.s32.totalorder %s14, 0
    %p170 = por %p168, %p169
    %p171 = scmp.ne.s32.totalorder %s160, %s163
    %p172 = scmp.eq.s32.totalorder %s19, 1
    %p173 = por %p171, %p172
    %p174 = scmp.ne.s32.totalorder %s163, %s164
    %p175 = scmp.eq.s32.totalorder %s19, 0
    %p176 = por %p174, %p175
    %p177 = scmp.ne.s32.totalorder %s163, %s164
    %p178 = scmp.eq.s32.totalorder %s20, 1
    %p179 = por %p177, %p178
    %p181 = scmp.ne.s32.totalorder %s164, %s180
    %p182 = scmp.eq.s32.totalorder %s20, 0
    %p183 = por %p181, %p182
    %s184 = ssub.s32 %s14, %s21
    %p185 = scmp.eq.s32.totalorder %s184, 0
    %s187 = sadd.s32 %s186, 1
    %s188 = scalar_select %p185, %s186, %s187
    %p191 = pneg %p185
    %p192 = scmp.eq.s32.totalorder %s14, 1
    %p193 = por %p191, %p192
    %p194 = scmp.ne.s32.totalorder %s186, %s189
    %p195 = scmp.eq.s32.totalorder %s14, 0
    %p196 = por %p194, %p195
    %p197 = scmp.ne.s32.totalorder %s186, %s189
    %p198 = scmp.eq.s32.totalorder %s19, 1
    %p199 = por %p197, %p198
    %p200 = scmp.ne.s32.totalorder %s189, %s190
    %p201 = scmp.eq.s32.totalorder %s19, 0
    %p202 = por %p200, %p201
    %p203 = scmp.ne.s32.totalorder %s189, %s190
    %p204 = scmp.eq.s32.totalorder %s20, 1
    %p205 = por %p203, %p204
    %p207 = scmp.ne.s32.totalorder %s190, %s206
    %p208 = scmp.eq.s32.totalorder %s20, 0
    %p209 = por %p207, %p208
    %p210 = scmp.le.s32.totalorder 1, %s14
    %p211 = scmp.lt.s32.totalorder %s14, 3
    %p212 = pnand %p210, %p211
    %p213 = pneg %p212
    // Predicated region
    $region9: #{lif_cell_forward.1} parent=5 // pred_check
      _
    $region10: #{lif_cell_forward.1} parent=5 // pred_check_branch
      %215 = sbr.rel (%p212) target = $region12
    $region11: #{lif_cell_forward.1} parent=5 // pred_region
      %s216 = ssub.s32 %s14, 1
      // Predicated region
      $region13: #{lif_cell_forward.1} parent=11 // pred_check
        %p217 = pneg %p61
      $region14: #{lif_cell_forward.1} parent=11 // pred_check_branch
        %219 = sbr.rel (%p217) target = $region16
      $region15: #{lif_cell_forward.1} parent=11 // pred_region
        _
      $region16: #{lif_cell_forward.1} parent=11 // pred_fallthru
        _
      // Predicated region
      $region17: #{lif_cell_forward.1} parent=11 // pred_check
        %p220 = pneg %p82
      $region18: #{lif_cell_forward.1} parent=11 // pred_check_branch
        %222 = sbr.rel (%p220) target = $region20
      $region19: #{lif_cell_forward.1} parent=11 // pred_region
        _
      $region20: #{lif_cell_forward.1} parent=11 // pred_fallthru
        _
      // Predicated region
      $region21: #{lif_cell_forward.1} parent=11 // pred_check
        %p223 = pneg %p103
      $region22: #{lif_cell_forward.1} parent=11 // pred_check_branch
        %225 = sbr.rel (%p223) target = $region24
      $region23: #{lif_cell_forward.1} parent=11 // pred_region
        _
      $region24: #{lif_cell_forward.1} parent=11 // pred_fallthru
        _
      // Predicated region
      $region25: #{lif_cell_forward.1} parent=11 // pred_check
        %p226 = pneg %p124
      $region26: #{lif_cell_forward.1} parent=11 // pred_check_branch
        %228 = sbr.rel (%p226) target = $region28
      $region27: #{lif_cell_forward.1} parent=11 // pred_region
        _
      $region28: #{lif_cell_forward.1} parent=11 // pred_fallthru
        _
    $region12: #{lif_cell_forward.1} parent=5 // pred_fallthru
      _
    %p229 = scmp.lt.s32.totalorder %s14, 2
    // Predicated region
    $region29: #{lif_cell_forward.1} parent=5 // pred_check
      %p230 = pneg %p229
    $region30: #{lif_cell_forward.1} parent=5 // pred_check_branch
      %232 = sbr.rel (%p230) target = $region32
    $region31: #{lif_cell_forward.1} parent=5 // pred_region
      // Predicated region
      $region33: #{lif_cell_forward.1} parent=31 // pred_check
        %p233 = pneg %p34
      $region34: #{lif_cell_forward.1} parent=31 // pred_check_branch
        %235 = sbr.rel (%p233) target = $region36
      $region35: #{lif_cell_forward.1} parent=31 // pred_region
        %p236 = scmp.lt.s32.totalorder %s14, 1
        %s237 = scalar_select %p236, %s14, 1
        %s238 = smul.addr %s237, 16
        %s239 = smul.addr %s238, 4
        %s240 = scalar_lea.vmem %s0, %s239
      $region36: #{lif_cell_forward.1} parent=31 // pred_fallthru
        _
      // Predicated region
      $region37: #{lif_cell_forward.1} parent=31 // pred_check
        %p241 = pneg %p144
      $region38: #{lif_cell_forward.1} parent=31 // pred_check_branch
        %243 = sbr.rel (%p241) target = $region40
      $region39: #{lif_cell_forward.1} parent=31 // pred_region
        %p244 = scmp.lt.s32.totalorder %s14, 1
        %s245 = scalar_select %p244, %s14, 1
        %s246 = smul.addr %s245, 8
        %s247 = smul.addr %s246, 8
        %s248 = scalar_lea.vmem %s5, %s247
      $region40: #{lif_cell_forward.1} parent=31 // pred_fallthru
        _
    $region32: #{lif_cell_forward.1} parent=5 // pred_fallthru
      _
    %p249 = scmp.le.s32.totalorder 1, %s14
    %p250 = scmp.lt.s32.totalorder %s14, 3
    %p251 = pnand %p249, %p250
    %p252 = pneg %p251
    // Predicated region
    $region41: #{lif_cell_forward.1} parent=5 // pred_check
      _
    $region42: #{lif_cell_forward.1} parent=5 // pred_check_branch
      %254 = sbr.rel (%p251) target = $region44
    $region43: #{lif_cell_forward.1} parent=5 // pred_region
      %s255 = ssub.s32 %s14, 1
      %p256 = scmp.lt.s32.totalorder %s19, 1
      %s257 = scalar_select %p256, %s19, 1
      %s258 = smul.addr %s257, 16
      %s259 = smul.addr %s258, 4
      %s260 = scalar_lea.vmem %s0, %s259
      %p261 = pneg %p40
      %p262 = pneg %p37
      %p263 = pneg %p61
      %p264 = pneg %p58
      %p265 = pneg %p82
      %p266 = pneg %p79
      %p267 = pneg %p103
      %p268 = pneg %p100
      %p269 = pneg %p124
      %p270 = pneg %p121
      %p271 = scmp.lt.s32.totalorder %s19, 1
      %s272 = scalar_select %p271, %s19, 1
      %s273 = smul.addr %s272, 8
      %s274 = smul.addr %s273, 8
      %s275 = scalar_lea.vmem %s5, %s274
      %p276 = pneg %p150
      %p277 = pneg %p147
      %p278 = pneg %p176
      %p279 = pneg %p173
      %p280 = scmp.lt.s32.totalorder %s19, 1
      %s281 = scalar_select %p280, %s19, 1
      %s282 = smul.addr %s281, 8
      %s283 = smul.addr %s282, 8
      %s284 = scalar_lea.vmem %s6, %s283
      %p285 = pneg %p202
      %p286 = pneg %p199
      %p287 = scmp.lt.s32.totalorder %s19, 1
      %s288 = scalar_select %p287, %s19, 1
      %s289 = smul.addr %s288, 8
      %s290 = smul.addr %s289, 8
      %s291 = scalar_lea.vmem %s7, %s290
      %p292 = scmp.lt.s32.totalorder %s19, 1
      %s293 = scalar_select %p292, %s19, 1
      %s294 = smul.addr %s293, 16
      %s295 = smul.addr %s294, 4
      %s296 = scalar_lea.vmem %s0, %s295
      %p297 = scmp.lt.s32.totalorder %s19, 1
      %s298 = scalar_select %p297, %s19, 1
      %s299 = smul.addr %s298, 8
      %s300 = smul.addr %s299, 8
      %s301 = scalar_lea.vmem %s5, %s300
      %p302 = scmp.lt.s32.totalorder %s19, 1
      %s303 = scalar_select %p302, %s19, 1
      %s304 = smul.addr %s303, 8
      %s305 = smul.addr %s304, 8
      %s306 = scalar_lea.vmem %s6, %s305
      %p307 = scmp.lt.s32.totalorder %s19, 1
      %s308 = scalar_select %p307, %s19, 1
      %s309 = smul.addr %s308, 8
      %s310 = smul.addr %s309, 8
      %s311 = scalar_lea.vmem %s7, %s310
      %v313 = vld [vmem:[%s296] sm:$0xff]
      %v314 = vld [vmem:[%s296 + $0x8] sm:$0xff]
      %v315 = vld [vmem:[%s296 + $0x10] sm:$0xff]
      %v316 = vld [vmem:[%s296 + $0x18] sm:$0xff]
      %v317 = vld [vmem:[%s296 + $0x20] sm:$0xff]
      %v318 = vld [vmem:[%s296 + $0x28] sm:$0xff]
      %v319 = vld [vmem:[%s296 + $0x30] sm:$0xff]
      %v320 = vld [vmem:[%s296 + $0x38] sm:$0xff]
      %v321 = vld [vmem:[%s1] sm:$0xf]
      %v322 = vld [vmem:[%s1 + $0x4] sm:$0xf]
      %v323 = vld [vmem:[%s1 + $0x8] sm:$0xf]
      %v324 = vld [vmem:[%s1 + $0xc] sm:$0xf]
      %v325 = vld [vmem:[%s1 + $0x10] sm:$0xf]
      %v326 = vld [vmem:[%s1 + $0x14] sm:$0xf]
      %v327 = vld [vmem:[%s1 + $0x18] sm:$0xf]
      %v328 = vld [vmem:[%s1 + $0x1c] sm:$0xf]
      %v329 = vld [vmem:[%s1 + $0x20] sm:$0xf]
      %v330 = vld [vmem:[%s1 + $0x24] sm:$0xf]
      %v331 = vld [vmem:[%s1 + $0x28] sm:$0xf]
      %v332 = vld [vmem:[%s1 + $0x2c] sm:$0xf]
      %v333 = vld [vmem:[%s1 + $0x30] sm:$0xf]
      %v334 = vld [vmem:[%s1 + $0x34] sm:$0xf]
      %v335 = vld [vmem:[%s1 + $0x38] sm:$0xf]
      %v336 = vld [vmem:[%s1 + $0x3c] sm:$0xf]
      %v337 = vld [vmem:[%s1 + $0x40] sm:$0xf]
      %v338 = vld [vmem:[%s1 + $0x44] sm:$0xf]
      %v347 = vunpack.c.l.b16 %v313
      %v348 = vunpack.c.h.b16 %v313
      %v349 = vunpack.c.l.b16 %v314
      %v350 = vunpack.c.h.b16 %v314
      %v351 = vunpack.c.l.b16 %v315
      %v352 = vunpack.c.h.b16 %v315
      %v353 = vunpack.c.l.b16 %v316
      %v354 = vunpack.c.h.b16 %v316
      %v355 = vunpack.c.l.b16 %v317
      %v356 = vunpack.c.h.b16 %v317
      %v357 = vunpack.c.l.b16 %v318
      %v358 = vunpack.c.h.b16 %v318
      %v359 = vunpack.c.l.b16 %v319
      %v360 = vunpack.c.h.b16 %v319
      %v361 = vunpack.c.l.b16 %v320
      %v362 = vunpack.c.h.b16 %v320
      %v363 = vpack.c.b16 %v349, %v347
      %v364 = vpack.c.b16 %v350, %v348
      %v365 = vpack.c.b16 %v353, %v351
      %v366 = vpack.c.b16 %v354, %v352
      %v367 = vpack.c.b16 %v357, %v355
      %v368 = vpack.c.b16 %v358, %v356
      %v369 = vpack.c.b16 %v361, %v359
      %v370 = vpack.c.b16 %v362, %v360
      %v393 = vunpack.c.l.b16 %v321
      %v394 = vunpack.c.l.b16 %v322
      %v395 = vunpack.c.l.b16 %v323
      %v396 = vunpack.c.l.b16 %v324
      %v397 = vunpack.c.l.b16 %v325
      %v398 = vunpack.c.l.b16 %v326
      %v399 = vunpack.c.l.b16 %v327
      %v400 = vunpack.c.l.b16 %v328
      %v401 = vunpack.c.l.b16 %v329
      %v402 = vunpack.c.l.b16 %v330
      %v403 = vunpack.c.l.b16 %v331
      %v404 = vunpack.c.l.b16 %v332
      %v405 = vunpack.c.l.b16 %v333
      %v406 = vunpack.c.l.b16 %v334
      %v407 = vunpack.c.l.b16 %v335
      %v408 = vunpack.c.l.b16 %v336
      %v409 = vunpack.c.l.b16 %v337
      %v410 = vunpack.c.l.b16 %v338
      %v411 = vpack.c.b16 %v394, %v393
      %v412 = vpack.c.b16 %v396, %v395
      %v413 = vpack.c.b16 %v398, %v397
      %v414 = vpack.c.b16 %v400, %v399
      %v415 = vpack.c.b16 %v402, %v401
      %v416 = vpack.c.b16 %v404, %v403
      %v417 = vpack.c.b16 %v406, %v405
      %v418 = vpack.c.b16 %v408, %v407
      %v419 = vpack.c.b16 %v410, %v409
      %vm429 = vcmask 130048
      %v431 = vsel %vm429, %v364, 0
      %v434 = vsel %vm429, %v366, 0
      %v437 = vsel %vm429, %v368, 0
      %v440 = vsel %vm429, %v370, 0
      %442 = vmatprep.subr.bf16.mxu0 0
      %443 = vmatpush1.bf16.msra.mxu0 %v411
      %444 = vmatprep.subr.bf16.mxu0 0
      %445 = vmatpush1.bf16.msra.mxu0 %v412
      %446 = vmatprep.subr.bf16.mxu0 0
      %447 = vmatpush1.bf16.msra.mxu0 %v413
      %448 = vmatprep.subr.bf16.mxu0 0
      %449 = vmatpush1.bf16.msra.mxu0 %v414
      %450 = vmatprep.subr.bf16.mxu0 0
      %451 = vmatpush1.bf16.msra.mxu0 %v415
      %452 = vmatprep.subr.bf16.mxu0 0
      %453 = vmatpush1.bf16.msra.mxu0 %v416
      %454 = vmatprep.subr.bf16.mxu0 0
      %455 = vmatpush1.bf16.msra.mxu0 %v417
      %456 = vmatprep.subr.bf16.mxu0 0
      %457 = vmatpush1.bf16.msra.mxu0 %v418
      %458 = vmatprep.subr.bf16.mxu0 0
      %459 = vmatpush1.bf16.msra.mxu0 %v419
      %460 = vmatprep.subr.bf16.mxu0 0
      %461 = vmatpush1.bf16.msra.mxu0 0
      %462 = vmatprep.subr.bf16.mxu0 0
      %463 = vmatpush1.bf16.msra.mxu0 0
      %464 = vmatprep.subr.bf16.mxu0 0
      %465 = vmatpush1.bf16.msra.mxu0 0
      %466 = vmatprep.subr.bf16.mxu0 0
      %467 = vmatpush1.bf16.msra.mxu0 0
      %468 = vmatprep.subr.bf16.mxu0 0
      %469 = vmatpush1.bf16.msra.mxu0 0
      %470 = vmatprep.subr.bf16.mxu0 0
      %471 = vmatpush1.bf16.msra.mxu0 0
      %472 = vmatprep.subr.bf16.mxu0 0
      %473 = vmatpush1.bf16.msra.mxu0 0
      %474 = vmatprep.mubr.bf16.mxu0 %v431
      %475 = vmatmul.mubr.bf16.gmra.mrb[0].mxu0 %v363
      %v476 = vpop.f32.mrb[0].mxu0
      %v477 = vadd.f32 0.0, %v476
      %v478 = vpop.f32.mrb[0].mxu0
      %v479 = vpop.f32.mrb[0].mxu0
      %v480 = vadd.f32 0.0, %v479
      %v481 = vpop.f32.mrb[0].mxu0
      %482 = vmatprep.mubr.bf16.mxu0 %v434
      %483 = vmatmul.mubr.bf16.gmra.mrb[0].mxu0 %v365
      %v484 = vpop.f32.mrb[0].mxu0
      %v485 = vadd.f32 0.0, %v484
      %v486 = vpop.f32.mrb[0].mxu0
      %v487 = vpop.f32.mrb[0].mxu0
      %v488 = vadd.f32 0.0, %v487
      %v489 = vpop.f32.mrb[0].mxu0
      %490 = vmatprep.mubr.bf16.mxu0 %v437
      %491 = vmatmul.mubr.bf16.gmra.mrb[0].mxu0 %v367
      %v492 = vpop.f32.mrb[0].mxu0
      %v493 = vadd.f32 0.0, %v492
      %v494 = vpop.f32.mrb[0].mxu0
      %v495 = vpop.f32.mrb[0].mxu0
      %v496 = vadd.f32 0.0, %v495
      %v497 = vpop.f32.mrb[0].mxu0
      %498 = vmatprep.mubr.bf16.mxu0 %v440
      %499 = vmatmul.mubr.bf16.gmra.mrb[0].mxu0 %v369
      %v500 = vpop.f32.mrb[0].mxu0
      %v501 = vadd.f32 0.0, %v500
      %v502 = vpop.f32.mrb[0].mxu0
      %v503 = vpop.f32.mrb[0].mxu0
      %v504 = vadd.f32 0.0, %v503
      %v505 = vpop.f32.mrb[0].mxu0
      %506 = vdwg.mxu0
      %v507 = vadd.f32 %v477, %v480
      %v508 = vadd.f32 %v507, %v485
      %v509 = vadd.f32 %v508, %v488
      %v510 = vadd.f32 %v509, %v493
      %v511 = vadd.f32 %v510, %v496
      %v512 = vadd.f32 %v511, %v501
      %v513 = vadd.f32 %v512, %v504
      %v514 = vrot.slane %v513, 4
      %v515 = vadd.f32 %v513, %v514
      %v516 = vrot.slane %v515, 2
      %v517 = vadd.f32 %v515, %v516
      %v518 = vrot.slane %v517, 1
      %v519 = vadd.f32 %v517, %v518
      %v520 = vmul.f32 %v477, %v477
      %v521 = vmul.f32 %v480, %v480
      %v522 = vmul.f32 %v485, %v485
      %v523 = vmul.f32 %v488, %v488
      %v524 = vmul.f32 %v493, %v493
      %v525 = vmul.f32 %v496, %v496
      %v526 = vmul.f32 %v501, %v501
      %v527 = vmul.f32 %v504, %v504
      %v528 = vadd.f32 %v520, %v521
      %v529 = vadd.f32 %v528, %v522
      %v530 = vadd.f32 %v529, %v523
      %v531 = vadd.f32 %v530, %v524
      %v532 = vadd.f32 %v531, %v525
      %v533 = vadd.f32 %v532, %v526
      %v534 = vadd.f32 %v533, %v527
      %v535 = vrot.slane %v534, 4
      %v536 = vadd.f32 %v534, %v535
      %v537 = vrot.slane %v536, 2
      %v538 = vadd.f32 %v536, %v537
      %v539 = vrot.slane %v538, 1
      %v540 = vadd.f32 %v538, %v539
      %vm541 = vcmask 1040384
      %v542 = vsel %vm541, %v519, %v540
      %v543 = vld [vmem:[%s2] sm:$0xff]
      %v544 = vld [vmem:[%s2 + $0x8] sm:$0xff]
      %v545 = vld [vmem:[%s2 + $0x10] sm:$0xff]
      %v546 = vld [vmem:[%s2 + $0x18] sm:$0xff]
      %v547 = vld [vmem:[%s2 + $0x20] sm:$0xff]
      %v548 = vld [vmem:[%s2 + $0x28] sm:$0xff]
      %v549 = vld [vmem:[%s2 + $0x30] sm:$0xff]
      %v550 = vld [vmem:[%s2 + $0x38] sm:$0xff]
      %v551 = vld [vmem:[%s2 + $0x40] sm:$0xff]
      %v552 = vld [vmem:[%s2 + $0x48] sm:$0xff]
      %v553 = vld [vmem:[%s2 + $0x50] sm:$0xff]
      %v554 = vld [vmem:[%s2 + $0x58] sm:$0xff]
      %v555 = vld [vmem:[%s2 + $0x60] sm:$0xff]
      %v556 = vld [vmem:[%s2 + $0x68] sm:$0xff]
      %v557 = vld [vmem:[%s2 + $0x70] sm:$0xff]
      %v558 = vld [vmem:[%s2 + $0x78] sm:$0xff]
      %559 = vmatprep.subr.mxu0 0.0
      %560 = vmatpush1.msra.mxu0 %v543
      %561 = vmatprep.subr.mxu0 0.0
      %562 = vmatpush1.msra.mxu0 %v544
      %563 = vmatprep.subr.mxu0 0.0
      %564 = vmatpush1.msra.mxu0 %v545
      %565 = vmatprep.subr.mxu0 0.0
      %566 = vmatpush1.msra.mxu0 %v546
      %567 = vmatprep.subr.mxu0 0.0
      %568 = vmatpush1.msra.mxu0 %v547
      %569 = vmatprep.subr.mxu0 0.0
      %570 = vmatpush1.msra.mxu0 %v548
      %571 = vmatprep.subr.mxu0 0.0
      %572 = vmatpush1.msra.mxu0 %v549
      %573 = vmatprep.subr.mxu0 0.0
      %574 = vmatpush1.msra.mxu0 %v550
      %575 = vmatprep.subr.mxu0 0.0
      %576 = vmatpush1.msra.mxu0 %v551
      %577 = vmatprep.subr.mxu0 0.0
      %578 = vmatpush1.msra.mxu0 %v552
      %579 = vmatprep.subr.mxu0 0.0
      %580 = vmatpush1.msra.mxu0 %v553
      %581 = vmatprep.subr.mxu0 0.0
      %582 = vmatpush1.msra.mxu0 %v554
      %583 = vmatprep.subr.mxu0 0.0
      %584 = vmatpush1.msra.mxu0 %v555
      %585 = vmatprep.subr.mxu0 0.0
      %586 = vmatpush1.msra.mxu0 %v556
      %587 = vmatprep.subr.mxu0 0.0
      %588 = vmatpush1.msra.mxu0 %v557
      %589 = vmatprep.subr.mxu0 0.0
      %590 = vmatpush1.msra.mxu0 %v558
      %591 = vmatprep.subr.mxu0 0.0
      %592 = vmatpush1.msra.mxu0 0.0
      %593 = vmatprep.subr.mxu0 0.0
      %594 = vmatpush1.msra.mxu0 0.0
      %595 = vmatprep.subr.mxu0 0.0
      %596 = vmatpush1.msra.mxu0 0.0
      %597 = vmatprep.subr.mxu0 0.0
      %598 = vmatpush1.msra.mxu0 0.0
      %599 = vmatprep.subr.mxu0 0.0
      %600 = vmatpush1.msra.mxu0 0.0
      %601 = vmatprep.subr.mxu0 0.0
      %602 = vmatpush1.msra.mxu0 0.0
      %603 = vmatprep.subr.mxu0 0.0
      %604 = vmatpush1.msra.mxu0 0.0
      %605 = vmatprep.subr.mxu0 0.0
      %606 = vmatpush1.msra.mxu0 0.0
      %607 = vmatprep.subr.mxu0 0.0
      %608 = vmatpush1.msra.mxu0 0.0
      %609 = vmatprep.subr.mxu0 0.0
      %610 = vmatpush1.msra.mxu0 0.0
      %611 = vmatprep.subr.mxu0 0.0
      %612 = vmatpush1.msra.mxu0 0.0
      %613 = vmatprep.subr.mxu0 0.0
      %614 = vmatpush1.msra.mxu0 0.0
      %615 = vmatprep.subr.mxu0 0.0
      %616 = vmatpush1.msra.mxu0 0.0
      %617 = vmatprep.subr.mxu0 0.0
      %618 = vmatpush1.msra.mxu0 0.0
      %619 = vmatprep.subr.mxu0 0.0
      %620 = vmatpush1.msra.mxu0 0.0
      %621 = vmatprep.subr.mxu0 0.0
      %622 = vmatpush1.msra.mxu0 0.0
      %623 = vmatprep.mubr.f32.mxu0 0.0
      %624 = vmatmul.mubr.f32.gmra.mrb[0].mxu0 %v542
      %v625 = vpop.f32.mrb[0].mxu0
      %v626 = vadd.f32 0.0, %v625
      %v627 = vpop.f32.mrb[0].mxu0
      %628 = vdwg.mxu0
      %v629 = vmul.f32 %v626, 0.001953125
      %v630 = vmul.f32 %v629, %v629
      %v632 = vrot.slane %v630, 7
      %v634 = vsub.f32 %v629, %v632
      %v635 = vadd.f32 %v634, 1e-05
      %v636 = vrsqrt.pop %v635
      %v637 = vld [vmem:[%s3] sm:$0x1]
      %v638 = vmul.f32 %v636, 0.5
      %v640 = vlaneseq
      %v641 = vshrl.u32 %v640, 7
      %v642 = vsub.s32 0, %v641
      %v643 = vrot.slane %v637, %v642
      %v645 = vmul.f32 %v638, %v643
      %v646 = vld [vmem:[%s4] sm:$0x1]
      %v648 = vrot.slane %v636, 1
      %v650 = vmul.f32 %v629, %v648
      %v651 = vmul.f32 %v650, %v637
      %v652 = vsub.f32 %v646, %v651
      %v653 = vmul.f32 %v652, 0.5
      %v654 = vld [vmem:[%s301] sm:$0xff]
      %v655 = vld [vmem:[%s301 + $0x8] sm:$0xff]
      %v656 = vld [vmem:[%s301 + $0x10] sm:$0xff]
      %v657 = vld [vmem:[%s301 + $0x18] sm:$0xff]
      %v658 = vld [vmem:[%s301 + $0x20] sm:$0xff]
      %v659 = vld [vmem:[%s301 + $0x28] sm:$0xff]
      %v660 = vld [vmem:[%s301 + $0x30] sm:$0xff]
      %v661 = vld [vmem:[%s301 + $0x38] sm:$0xff]
      %v662 = vmul.f32 %v654, 0.5
      %v663 = vmul.f32 %v655, 0.5
      %v664 = vmul.f32 %v656, 0.5
      %v665 = vmul.f32 %v657, 0.5
      %v666 = vmul.f32 %v658, 0.5
      %v667 = vmul.f32 %v659, 0.5
      %v668 = vmul.f32 %v660, 0.5
      %v669 = vmul.f32 %v661, 0.5
      %v670 = vlaneseq
      %v671 = vshrl.u32 %v670, 7
      %v672 = vsub.s32 1, %v671
      %v673 = vrot.slane %v645, %v672
      %v674 = vmul.f32 %v477, %v673
      %v675 = vmul.f32 %v480, %v673
      %v676 = vmul.f32 %v485, %v673
      %v677 = vmul.f32 %v488, %v673
      %v678 = vmul.f32 %v493, %v673
      %v679 = vmul.f32 %v496, %v673
      %v680 = vmul.f32 %v501, %v673
      %v681 = vmul.f32 %v504, %v673
      %v682 = vadd.f32 %v662, %v674
      %v683 = vadd.f32 %v663, %v675
      %v684 = vadd.f32 %v664, %v676
      %v685 = vadd.f32 %v665, %v677
      %v686 = vadd.f32 %v666, %v678
      %v687 = vadd.f32 %v667, %v679
      %v688 = vadd.f32 %v668, %v680
      %v689 = vadd.f32 %v669, %v681
      %v691 = vlaneseq
      %v692 = vshrl.u32 %v691, 7
      %v693 = vsub.s32 0, %v692
      %v694 = vrot.slane %v653, %v693
      %v696 = vadd.f32 %v682, %v694
      %v697 = vadd.f32 %v683, %v694
      %v698 = vadd.f32 %v684, %v694
      %v699 = vadd.f32 %v685, %v694
      %v700 = vadd.f32 %v686, %v694
      %v701 = vadd.f32 %v687, %v694
      %v702 = vadd.f32 %v688, %v694
      %v703 = vadd.f32 %v689, %v694
      %vm704 = vcmp.ge.f32.partialorder %v696, 1.0
      %vm705 = vcmp.ge.f32.partialorder %v697, 1.0
      %vm706 = vcmp.ge.f32.partialorder %v698, 1.0
      %vm707 = vcmp.ge.f32.partialorder %v699, 1.0
      %vm708 = vcmp.ge.f32.partialorder %v700, 1.0
      %vm709 = vcmp.ge.f32.partialorder %v701, 1.0
      %vm710 = vcmp.ge.f32.partialorder %v702, 1.0
      %vm711 = vcmp.ge.f32.partialorder %v703, 1.0
      %v712 = vsel %vm704, 1, 0
      %v713 = vsel %vm705, 1, 0
      %v714 = vsel %vm706, 1, 0
      %v715 = vsel %vm707, 1, 0
      %v716 = vsel %vm708, 1, 0
      %v717 = vsel %vm709, 1, 0
      %v718 = vsel %vm710, 1, 0
      %v719 = vsel %vm711, 1, 0
      %v720 = vcvt.s32.f32 %v712
      %v721 = vcvt.s32.f32 %v713
      %v722 = vcvt.s32.f32 %v714
      %v723 = vcvt.s32.f32 %v715
      %v724 = vcvt.s32.f32 %v716
      %v725 = vcvt.s32.f32 %v717
      %v726 = vcvt.s32.f32 %v718
      %v727 = vcvt.s32.f32 %v719
      %728 = vst [vmem:[%s306] sm:$0xff] %v720
      %729 = vst [vmem:[%s306 + $0x8] sm:$0xff] %v721
      %730 = vst [vmem:[%s306 + $0x10] sm:$0xff] %v722
      %731 = vst [vmem:[%s306 + $0x18] sm:$0xff] %v723
      %732 = vst [vmem:[%s306 + $0x20] sm:$0xff] %v724
      %733 = vst [vmem:[%s306 + $0x28] sm:$0xff] %v725
      %734 = vst [vmem:[%s306 + $0x30] sm:$0xff] %v726
      %735 = vst [vmem:[%s306 + $0x38] sm:$0xff] %v727
      %v736 = vsub.f32 %v696, %v720
      %v737 = vsub.f32 %v697, %v721
      %v738 = vsub.f32 %v698, %v722
      %v739 = vsub.f32 %v699, %v723
      %v740 = vsub.f32 %v700, %v724
      %v741 = vsub.f32 %v701, %v725
      %v742 = vsub.f32 %v702, %v726
      %v743 = vsub.f32 %v703, %v727
      %744 = vst [vmem:[%s311] sm:$0xff] %v736
      %745 = vst [vmem:[%s311 + $0x8] sm:$0xff] %v737
      %746 = vst [vmem:[%s311 + $0x10] sm:$0xff] %v738
      %747 = vst [vmem:[%s311 + $0x18] sm:$0xff] %v739
      %748 = vst [vmem:[%s311 + $0x20] sm:$0xff] %v740
      %749 = vst [vmem:[%s311 + $0x28] sm:$0xff] %v741
      %750 = vst [vmem:[%s311 + $0x30] sm:$0xff] %v742
      %751 = vst [vmem:[%s311 + $0x38] sm:$0xff] %v743
      %p752 = scmp.lt.s32.totalorder %s19, 1
      %s753 = scalar_select %p752, %s19, 1
      %s754 = smul.addr %s753, 8
      %s755 = smul.addr %s754, 8
      %s756 = scalar_lea.vmem %s6, %s755
      %p757 = scmp.lt.s32.totalorder %s19, 1
      %s758 = scalar_select %p757, %s19, 1
      %s759 = smul.addr %s758, 8
      %s760 = smul.addr %s759, 8
      %s761 = scalar_lea.vmem %s7, %s760
      // Predicated region
      $region45: #{lif_cell_forward.1} parent=43 // pred_check
        %p762 = pneg %p173
      $region46: #{lif_cell_forward.1} parent=43 // pred_check_branch
        %764 = sbr.rel (%p762) target = $region48
      $region47: #{lif_cell_forward.1} parent=43 // pred_region
        _
      $region48: #{lif_cell_forward.1} parent=43 // pred_fallthru
        _
      // Predicated region
      $region49: #{lif_cell_forward.1} parent=43 // pred_check
        %p765 = pneg %p199
      $region50: #{lif_cell_forward.1} parent=43 // pred_check_branch
        %767 = sbr.rel (%p765) target = $region52
      $region51: #{lif_cell_forward.1} parent=43 // pred_region
        _
      $region52: #{lif_cell_forward.1} parent=43 // pred_fallthru
        _
    $region44: #{lif_cell_forward.1} parent=5 // pred_fallthru
      _
    %p768 = scmp.le.s32.totalorder 2, %s14
    // Predicated region
    $region53: #{lif_cell_forward.1} parent=5 // pred_check
      %p769 = pneg %p768
    $region54: #{lif_cell_forward.1} parent=5 // pred_check_branch
      %771 = sbr.rel (%p769) target = $region56
    $region55: #{lif_cell_forward.1} parent=5 // pred_region
      %s772 = ssub.s32 %s14, 2
      // Predicated region
      $region57: #{lif_cell_forward.1} parent=55 // pred_check
        %p773 = pneg %p179
      $region58: #{lif_cell_forward.1} parent=55 // pred_check_branch
        %775 = sbr.rel (%p773) target = $region60
      $region59: #{lif_cell_forward.1} parent=55 // pred_region
        %p776 = scmp.lt.s32.totalorder %s20, 1
        %s777 = scalar_select %p776, %s20, 1
        %s778 = smul.addr %s777, 8
        %s779 = smul.addr %s778, 8
        %s780 = scalar_lea.vmem %s6, %s779
      $region60: #{lif_cell_forward.1} parent=55 // pred_fallthru
        _
      // Predicated region
      $region61: #{lif_cell_forward.1} parent=55 // pred_check
        %p781 = pneg %p205
      $region62: #{lif_cell_forward.1} parent=55 // pred_check_branch
        %783 = sbr.rel (%p781) target = $region64
      $region63: #{lif_cell_forward.1} parent=55 // pred_region
        %p784 = scmp.lt.s32.totalorder %s20, 1
        %s785 = scalar_select %p784, %s20, 1
        %s786 = smul.addr %s785, 8
        %s787 = smul.addr %s786, 8
        %s788 = scalar_lea.vmem %s7, %s787
      $region64: #{lif_cell_forward.1} parent=55 // pred_fallthru
        _
    $region56: #{lif_cell_forward.1} parent=5 // pred_fallthru
      _
  $region6: #{lif_cell_forward.1} parent=0 // loop_footer
    %s18 = sadd.s32 1, %s14
  $region7: #{lif_cell_forward.1} parent=0 // loop_footer_branch
    %13 = sbr.rel target = $region3
  $region8: #{lif_cell_forward.1} parent=0 // loop_exit
    _

</llo_original>
